<compile_context>
chip_gen: v6e
topology: v6e:2x2x1
jax: 0.10.0
libtpu: 0.0.40
codegen_flags: <defaults>
</compile_context>

<pallas_src>
from functools import partial

import jax
import jax.numpy as jnp
from jax.experimental import pallas as pl
from jax.experimental.pallas import tpu as pltpu


def _ipow(x, n: int):
    # integer power via repeated multiply (gamma is an integer here)
    r = x
    for _ in range(n - 1):
        r = r * x
    return r


def focal_loss_kernel(x0_ref, x1_ref, t_ref, out_ref, acc_ref, *,
                      gamma: int, alpha: float, n_valid: int,
                      size_average: bool):
    pid = pl.program_id(0)
    nsteps = pl.num_programs(0)

    @pl.when(pid == 0)
    def _():
        acc_ref[0] = jnp.float32(0.0)

    x0 = x0_ref[...].astype(jnp.float32)          # (T, 128) class-0 logits
    x1 = x1_ref[...].astype(jnp.float32)          # (T, 128) class-1 logits
    t = t_ref[...]                                # (T, 128) int32 targets
    tile_rows, lanes = x0.shape

    # NOTE: any target != 1 is treated as class 0 (PyTorch gather would error
    # on out-of-range ids).
    is1 = t == 1
    x_t = jnp.where(is1, x1, x0)                  # logit of the target class
    x_o = jnp.where(is1, x0, x1)                  # logit of the other class

    # Analytic 2-class log-softmax at the target class: logpt = -softplus(d).
    d = x_o - x_t
    e = jnp.exp(-jnp.abs(d))                      # single EUP exp per element
    logpt = -(jnp.maximum(d, 0.0) + jnp.log1p(e))
    # pt = exp(logpt) = sigmoid(-d), derived from e (no second exp).
    pt = jnp.where(d >= 0.0, e, 1.0) * pl.reciprocal(1.0 + e, approx=False)

    # alpha table [a, 1-a] gathered by target -> pure VPU select.
    at = jnp.where(is1, jnp.float32(1.0 - alpha), jnp.float32(alpha))

    loss = -_ipow(1.0 - pt, gamma) * (at * logpt)

    # Mask out padded samples (flat index = row*128 + lane).
    ridx = jax.lax.broadcasted_iota(jnp.int32, (tile_rows, lanes), 0)
    lidx = jax.lax.broadcasted_iota(jnp.int32, (tile_rows, lanes), 1)
    gidx = (pid * tile_rows + ridx) * lanes + lidx
    loss = jnp.where(gidx < n_valid, loss, 0.0)

    acc_ref[0] += jnp.sum(loss)

    @pl.when(pid == nsteps - 1)
    def _():
        total = acc_ref[0]
        if size_average:
            total = total * jnp.float32(1.0 / n_valid)
        out_ref[0, 0] = total


def focal_loss(inp, target, *, gamma=2, alpha=0.5, size_average=True,
               max_tile_rows=512):
    """Pallas FocalLoss.  inp: (M, C) or (B, C, *spatial) logits; target: int ids."""
    # Flatten exactly like the PyTorch module.
    if inp.ndim > 2:
        b, c = inp.shape[0], inp.shape[1]
        inp = inp.reshape(b, c, -1)
        inp = jnp.transpose(inp, (0, 2, 1)).reshape(-1, c)
    m, c = inp.shape
    # float alpha builds the 2-entry table [a, 1-a] -> binary classification.
    assert c == 2, "lane-dense analytic path assumes num_classes == 2"
    target = target.reshape(-1).astype(jnp.int32)

    x0 = inp[:, 0]
    x1 = inp[:, 1]

    lanes = 128
    rows = pl.cdiv(m, lanes)
    tile_rows = min(int(max_tile_rows), max(8, ((rows + 7) // 8) * 8))
    rows_padded = ((rows + tile_rows - 1) // tile_rows) * tile_rows
    m_padded = rows_padded * lanes

    def to_slab(v, fill):
        v = jnp.pad(v, (0, m_padded - m), constant_values=fill)
        return v.reshape(rows_padded, lanes)

    x0s = to_slab(x0, 0)                 # native dtype, lane-dense
    x1s = to_slab(x1, 0)
    ts = to_slab(target, 0)

    grid = (rows_padded // tile_rows,)
    kernel = partial(focal_loss_kernel,
                     gamma=int(gamma),
                     alpha=float(alpha),
                     n_valid=int(m),
                     size_average=bool(size_average))

    out = pl.pallas_call(
        kernel,
        out_shape=jax.ShapeDtypeStruct((1, 1), jnp.float32),
        grid=grid,
        in_specs=[
            pl.BlockSpec((tile_rows, lanes), lambda i: (i, 0)),   # x0 slab
            pl.BlockSpec((tile_rows, lanes), lambda i: (i, 0)),   # x1 slab
            pl.BlockSpec((tile_rows, lanes), lambda i: (i, 0)),   # targets
        ],
        out_specs=pl.BlockSpec(memory_space=pltpu.MemorySpace.SMEM),
        scratch_shapes=[pltpu.SMEM((1,), jnp.float32)],
        compiler_params=pltpu.CompilerParams(
            dimension_semantics=("arbitrary",)),
        # TODO(synk): on v7x, split the slab axis across both TensorCores
        # (two partial sums combined in the wrapper) for ~2x on large M.
    )(x0s, x1s, ts)
    return out[0, 0]


def focal_loss_reference(inp, target, *, gamma=2, alpha=0.5,
                         size_average=True):
    if inp.ndim > 2:
        b, c = inp.shape[0], inp.shape[1]
        inp = inp.reshape(b, c, -1)
        inp = jnp.transpose(inp, (0, 2, 1)).reshape(-1, c)
    inp = inp.astype(jnp.float32)
    target = target.reshape(-1).astype(jnp.int32)
    logp = jax.nn.log_softmax(inp, axis=-1)
    logpt = jnp.take_along_axis(logp, target[:, None], axis=1)[:, 0]
    pt = jnp.exp(logpt)
    alpha_t = jnp.array([alpha, 1.0 - alpha], dtype=jnp.float32)
    at = alpha_t[target]
    loss = -1.0 * (1.0 - pt) ** gamma * (at * logpt)
    return loss.mean() if size_average else loss.sum()


if __name__ == "__main__":
    key = jax.random.PRNGKey(0)
    k1, k2 = jax.random.split(key)

    # Binary segmentation-style shapes implied by the module:
    # logits (B, C=2, H, W), targets (B, H, W) with class ids in {0, 1}.
    B, C, H, W = 2, 2, 16, 16
    logits = jax.random.normal(k1, (B, C, H, W), dtype=jnp.float32)
    target = jax.random.randint(k2, (B, H, W), 0, C, dtype=jnp.int32)

    loss = focal_loss(logits, target)
    loss = jax.block_until_ready(loss)

    ref = focal_loss_reference(logits, target)
    assert jnp.allclose(loss, ref, rtol=1e-5, atol=1e-5), (loss, ref)

    print("KERNEL_OK")
</pallas_src>

<mosaic_0001>
module attributes {stable_mosaic.version = 11 : i64} {
  func.func @focal_loss_kernel(%arg0: i32, %arg1: memref<8x128xf32, #tpu.memory_space<vmem>>, %arg2: memref<8x128xf32, #tpu.memory_space<vmem>>, %arg3: memref<8x128xi32, #tpu.memory_space<vmem>>, %arg4: memref<1x1xf32, #tpu.memory_space<smem>>, %arg5: memref<1xf32, #tpu.memory_space<smem>>) attributes {dimension_semantics = [#tpu.dimension_semantics<arbitrary>], iteration_bounds = array<i64: 1>, scalar_prefetch = 0 : i64, scratch_operands = 1 : i64, tpu.core_type = #tpu.core_type<tc>, window_params = [{transform_indices = @transform_0, window_bounds = array<i64: 8, 128>}, {transform_indices = @transform_1, window_bounds = array<i64: 8, 128>}, {transform_indices = @transform_2, window_bounds = array<i64: 8, 128>}, {transform_indices = @transform_3, window_bounds = array<i64: 1, 1>}]} {
    %c0_i32 = arith.constant 0 : i32
    %0 = arith.cmpi eq, %arg0, %c0_i32 : i32
    %1 = arith.extui %0 : i1 to i32
    %c0_i32_0 = arith.constant 0 : i32
    %2 = arith.cmpi ne, %1, %c0_i32_0 : i32
    scf.if %2 {
      %cst_21 = arith.constant 0.000000e+00 : f32
      %c0_22 = arith.constant 0 : index
      %61 = memref.load %arg5[%c0_22] : memref<1xf32, #tpu.memory_space<smem>>
      memref.store %cst_21, %arg5[%c0_22] : memref<1xf32, #tpu.memory_space<smem>>
    } else {
    }
    %c0 = arith.constant 0 : index
    %c0_1 = arith.constant 0 : index
    %3 = vector.load %arg1[%c0, %c0_1] : memref<8x128xf32, #tpu.memory_space<vmem>>, vector<8x128xf32>
    %c0_2 = arith.constant 0 : index
    %c0_3 = arith.constant 0 : index
    %4 = vector.load %arg2[%c0_2, %c0_3] : memref<8x128xf32, #tpu.memory_space<vmem>>, vector<8x128xf32>
    %c0_4 = arith.constant 0 : index
    %c0_5 = arith.constant 0 : index
    %5 = vector.load %arg3[%c0_4, %c0_5] : memref<8x128xi32, #tpu.memory_space<vmem>>, vector<8x128xi32>
    %c1_i32 = arith.constant 1 : i32
    %6 = vector.broadcast %c1_i32 : i32 to vector<8x128xi32>
    %7 = arith.cmpi eq, %5, %6 : vector<8x128xi32>
    %8 = arith.select %7, %4, %3 : vector<8x128xi1>, vector<8x128xf32>
    %9 = arith.select %7, %3, %4 : vector<8x128xi1>, vector<8x128xf32>
    %10 = arith.subf %9, %8 : vector<8x128xf32>
    %11 = math.absf %10 : vector<8x128xf32>
    %cst = arith.constant 0.000000e+00 : f32
    %12 = vector.broadcast %cst : f32 to vector<8x128xf32>
    %13 = arith.subf %12, %11 : vector<8x128xf32>
    %14 = math.exp %13 : vector<8x128xf32>
    %cst_6 = arith.constant 0.000000e+00 : f32
    %15 = vector.broadcast %cst_6 : f32 to vector<8x128xf32>
    %16 = arith.maximumf %10, %15 : vector<8x128xf32>
    %17 = math.log1p %14 : vector<8x128xf32>
    %18 = arith.addf %16, %17 : vector<8x128xf32>
    %cst_7 = arith.constant 0.000000e+00 : f32
    %19 = vector.broadcast %cst_7 : f32 to vector<8x128xf32>
    %20 = arith.subf %19, %18 : vector<8x128xf32>
    %cst_8 = arith.constant 0.000000e+00 : f32
    %21 = vector.broadcast %cst_8 : f32 to vector<8x128xf32>
    %22 = arith.cmpf oge, %10, %21 : vector<8x128xf32>
    %cst_9 = arith.constant 1.000000e+00 : f32
    %23 = vector.broadcast %cst_9 : f32 to vector<8x128xf32>
    %24 = arith.select %22, %14, %23 : vector<8x128xi1>, vector<8x128xf32>
    %cst_10 = arith.constant 1.000000e+00 : f32
    %25 = vector.broadcast %cst_10 : f32 to vector<8x128xf32>
    %26 = arith.addf %25, %14 : vector<8x128xf32>
    %27 = tpu.reciprocal %26 : vector<8x128xf32> -> vector<8x128xf32>
    %28 = arith.mulf %24, %27 : vector<8x128xf32>
    %cst_11 = arith.constant 5.000000e-01 : f32
    %cst_12 = arith.constant 5.000000e-01 : f32
    %29 = vector.broadcast %cst_11 : f32 to vector<8x128xf32>
    %30 = vector.broadcast %cst_12 : f32 to vector<8x128xf32>
    %31 = arith.select %7, %29, %30 : vector<8x128xi1>, vector<8x128xf32>
    %cst_13 = arith.constant 1.000000e+00 : f32
    %32 = vector.broadcast %cst_13 : f32 to vector<8x128xf32>
    %33 = arith.subf %32, %28 : vector<8x128xf32>
    %34 = arith.mulf %33, %33 : vector<8x128xf32>
    %cst_14 = arith.constant 0.000000e+00 : f32
    %35 = vector.broadcast %cst_14 : f32 to vector<8x128xf32>
    %36 = arith.subf %35, %34 : vector<8x128xf32>
    %37 = arith.mulf %31, %20 : vector<8x128xf32>
    %38 = arith.mulf %36, %37 : vector<8x128xf32>
    %39 = tpu.iota {dimensions = array<i32: 0>} : vector<8x128xi32>
    %40 = tpu.iota {dimensions = array<i32: 1>} : vector<8x128xi32>
    %c8_i32 = arith.constant 8 : i32
    %41 = arith.muli %arg0, %c8_i32 : i32
    %42 = vector.broadcast %41 : i32 to vector<8x128xi32>
    %43 = arith.addi %42, %39 : vector<8x128xi32>
    %c128_i32 = arith.constant 128 : i32
    %44 = vector.broadcast %c128_i32 : i32 to vector<8x128xi32>
    %45 = arith.muli %43, %44 : vector<8x128xi32>
    %46 = arith.addi %45, %40 : vector<8x128xi32>
    %c512_i32 = arith.constant 512 : i32
    %47 = vector.broadcast %c512_i32 : i32 to vector<8x128xi32>
    %48 = arith.cmpi slt, %46, %47 : vector<8x128xi32>
    %cst_15 = arith.constant 0.000000e+00 : f32
    %49 = vector.broadcast %cst_15 : f32 to vector<8x128xf32>
    %50 = arith.select %48, %38, %49 : vector<8x128xi1>, vector<8x128xf32>
    %c0_16 = arith.constant 0 : index
    %51 = memref.load %arg5[%c0_16] : memref<1xf32, #tpu.memory_space<smem>>
    %52 = vector.shape_cast %50 : vector<8x128xf32> to vector<1x8x128xf32>
    %cst_17 = arith.constant dense<0.000000e+00> : vector<1xf32>
    %53 = vector.multi_reduction <add>, %52, %cst_17 [1, 2] : vector<1x8x128xf32> to vector<1xf32>
    %54 = vector.shape_cast %53 : vector<1xf32> to vector<1x1x1xf32>
    %55 = vector.extract %54[0, 0, 0] : f32 from vector<1x1x1xf32>
    %56 = arith.addf %51, %55 : f32
    %c0_18 = arith.constant 0 : index
    %57 = memref.load %arg5[%c0_18] : memref<1xf32, #tpu.memory_space<smem>>
    memref.store %56, %arg5[%c0_18] : memref<1xf32, #tpu.memory_space<smem>>
    %c0_i32_19 = arith.constant 0 : i32
    %58 = arith.cmpi eq, %arg0, %c0_i32_19 : i32
    %59 = arith.extui %58 : i1 to i32
    %c0_i32_20 = arith.constant 0 : i32
    %60 = arith.cmpi ne, %59, %c0_i32_20 : i32
    scf.if %60 {
      %c0_21 = arith.constant 0 : index
      %61 = memref.load %arg5[%c0_21] : memref<1xf32, #tpu.memory_space<smem>>
      %cst_22 = arith.constant 0.001953125 : f32
      %62 = arith.mulf %61, %cst_22 : f32
      %c0_23 = arith.constant 0 : index
      %c0_24 = arith.constant 0 : index
      %63 = memref.load %arg4[%c0_23, %c0_24] : memref<1x1xf32, #tpu.memory_space<smem>>
      memref.store %62, %arg4[%c0_23, %c0_24] : memref<1x1xf32, #tpu.memory_space<smem>>
    } else {
    }
    return
  }
  func.func @transform_0(%arg0: i32) -> (i32, i32) {
    %c0_i32 = arith.constant 0 : i32
    %c0_i32_0 = arith.constant 0 : i32
    return %arg0, %c0_i32 : i32, i32
  }
  func.func @transform_1(%arg0: i32) -> (i32, i32) {
    %c0_i32 = arith.constant 0 : i32
    %c0_i32_0 = arith.constant 0 : i32
    return %arg0, %c0_i32 : i32, i32
  }
  func.func @transform_2(%arg0: i32) -> (i32, i32) {
    %c0_i32 = arith.constant 0 : i32
    %c0_i32_0 = arith.constant 0 : i32
    return %arg0, %c0_i32 : i32, i32
  }
  func.func @transform_3(%arg0: i32) -> (i32, i32) {
    %c0_i32 = arith.constant 0 : i32
    %c0_i32_0 = arith.constant 0 : i32
    %c0_i32_1 = arith.constant 0 : i32
    return %c0_i32, %c0_i32_0 : i32, i32
  }
}

</mosaic_0001>

<llo_original>
// kernel: tpu_custom_call.1
$region0: #{tpu_custom_call.1}
  #allocation0 [shape = 'u32[]', space=smem, size = 0x4, offset = 0x4, fixed_abs, tag = 'smem constant byte address 0x4 - core index']
  #allocation1 [shape = 'u32[144,128]{1,0:T(1,128)}', space=vmem, size = 0x12000, scoped, tag = 'internal scratch']
  #allocation2 [shape = 'f32[1]{0:T(128)}', space=smem, size = 0x200, scoped, tag = 'scratch operand']
  %s0 = inlined_call_operand.hbm [shape: f32[8,128], index: 0, kind: input, shape index: {}]
  %s1 = inlined_call_operand.hbm [shape: f32[8,128], index: 1, kind: input, shape index: {}]
  %s2 = inlined_call_operand.hbm [shape: s32[8,128], index: 2, kind: input, shape index: {}]
  %s3 = inlined_call_operand.hbm [shape: f32[1,1], index: 3, kind: output, shape index: {}]
  %s4 = sld [smem:[#allocation0]]
  $region42: #{tpu_custom_call.1} parent=0
    _
  %s6 = ssub.s32 1, %s4
  %s7 = scalar_select 0, %s6, %s4
  $region1: #{tpu_custom_call.1} parent=0
    #allocation3 [shape = 'u8[4096]{0}', space=vmem, size = 0x1000, scoped, tag = 'input window, operand 0, single buffered']
    #allocation4 [shape = 's32[1]{0}', space=sflag, size = 0x4, scoped, tag = 'scoped memory for tpu_custom_call.1']
    #allocation5 [shape = 's32[1]{0}', space=sflag, size = 0x4, scoped, tag = 'scoped memory for tpu_custom_call.1']
    #allocation6 [shape = 'u8[4096]{0}', space=vmem, size = 0x1000, scoped, tag = 'input window, operand 1, single buffered']
    #allocation7 [shape = 's32[1]{0}', space=sflag, size = 0x4, scoped, tag = 'scoped memory for tpu_custom_call.1']
    #allocation8 [shape = 'u8[4096]{0}', space=vmem, size = 0x1000, scoped, tag = 'input window, operand 2, single buffered']
    #allocation9 [shape = 'u8[512]{0}', space=smem, size = 0x200, scoped, tag = 'output window, operand 0, single buffered']
    %8 = vsyncpa [#allocation4], 0
    %9 = vsyncpa [#allocation7], 0
    %10 = vsyncpa [#allocation5], 0
    // Predicated region
    $region2: #{tpu_custom_call.1} parent=1 // pred_check
      _
    $region3: #{tpu_custom_call.1} parent=1 // pred_check_branch
      %12 = sbr.rel (0) target = $region5
    $region4: #{tpu_custom_call.1} parent=1 // pred_region
      %s14 = ssub.s32 128, 128
      %15 = vsyncadd [#allocation4], %s14
      %s17 = sshll.u32 [#allocation3], 4
      %s18 = int_to_ptr.vmem [resolvable:$true] %s17
      %20 = dma.hbm_to_vmem [thread:$0]  %s0, 128, %s18, [#allocation4]
    $region5: #{tpu_custom_call.1} parent=1 // pred_fallthru
      _
    // Predicated region
    $region6: #{tpu_custom_call.1} parent=1 // pred_check
      _
    $region7: #{tpu_custom_call.1} parent=1 // pred_check_branch
      %22 = sbr.rel (0) target = $region9
    $region8: #{tpu_custom_call.1} parent=1 // pred_region
      %s24 = ssub.s32 128, 128
      %25 = vsyncadd [#allocation7], %s24
      %s27 = sshll.u32 [#allocation6], 4
      %s28 = int_to_ptr.vmem [resolvable:$true] %s27
      %30 = dma.hbm_to_vmem [thread:$0]  %s1, 128, %s28, [#allocation7]
    $region9: #{tpu_custom_call.1} parent=1 // pred_fallthru
      _
    // Predicated region
    $region10: #{tpu_custom_call.1} parent=1 // pred_check
      _
    $region11: #{tpu_custom_call.1} parent=1 // pred_check_branch
      %32 = sbr.rel (0) target = $region13
    $region12: #{tpu_custom_call.1} parent=1 // pred_region
      %s34 = ssub.s32 128, 128
      %35 = vsyncadd [#allocation7], %s34
      %s37 = sshll.u32 [#allocation8], 4
      %s38 = int_to_ptr.vmem [resolvable:$true] %s37
      %40 = dma.hbm_to_vmem [thread:$0]  %s2, 128, %s38, [#allocation7]
    $region13: #{tpu_custom_call.1} parent=1 // pred_fallthru
      _
    // Predicated region
    $region14: #{tpu_custom_call.1} parent=1 // pred_check
      _
    $region15: #{tpu_custom_call.1} parent=1 // pred_check_branch
      %42 = sbr.rel (0) target = $region17
    $region16: #{tpu_custom_call.1} parent=1 // pred_region
      %43 = dma.done [#allocation4], 128
    $region17: #{tpu_custom_call.1} parent=1 // pred_fallthru
      _
    // Predicated region
    $region18: #{tpu_custom_call.1} parent=1 // pred_check
      _
    $region19: #{tpu_custom_call.1} parent=1 // pred_check_branch
      %45 = sbr.rel (0) target = $region21
    $region20: #{tpu_custom_call.1} parent=1 // pred_region
      %46 = dma.done [#allocation7], 128
    $region21: #{tpu_custom_call.1} parent=1 // pred_fallthru
      _
    // Predicated region
    $region22: #{tpu_custom_call.1} parent=1 // pred_check
      _
    $region23: #{tpu_custom_call.1} parent=1 // pred_check_branch
      %48 = sbr.rel (0) target = $region25
    $region24: #{tpu_custom_call.1} parent=1 // pred_region
      %49 = dma.done [#allocation7], 128
    $region25: #{tpu_custom_call.1} parent=1 // pred_fallthru
      _
    %p50 = scmp.eq.s32.totalorder 0, 0
    // Predicated region
    $region26: #{tpu_custom_call.1} parent=1 // pred_check
      %p51 = pneg %p50
    $region27: #{tpu_custom_call.1} parent=1 // pred_check_branch
      %53 = sbr.rel (%p51) target = $region29
    $region28: #{tpu_custom_call.1} parent=1 // pred_region
      %s54 = scalar_lea.smem [#allocation2], 0
      %55 = sst [smem:[%s54]] 0.0
    $region29: #{tpu_custom_call.1} parent=1 // pred_fallthru
      _
    %v56 = vld [vmem:[#allocation3] sm:$0xff]
    %v57 = vld [vmem:[#allocation6] sm:$0xff]
    %v58 = vld [vmem:[#allocation8] sm:$0xff]
    %vm59 = vcmp.eq.s32.totalorder %v58, 1
    %v60 = vsel %vm59, %v57, %v56
    %v61 = vsel %vm59, %v56, %v57
    %v62 = vsub.f32 %v61, %v60
    %v63 = vand.u32 2147483647, %v62
    %v64 = vsub.f32 0.0, %v63
    %v65 = vmul.f32 %v64, 1.442695
    %v66 = vpow.pop %v65
    %v67 = vmax.f32 %v62, 0.0
    %v68 = vadd.f32 %v66, 1.0
    %v69 = vlog2.pop %v68
    %v70 = vmul.f32 %v69, 0.6931472
    %v71 = vmul.f32 -0.5, %v66
    %v72 = vadd.f32 %v71, 1.0
    %v73 = vmul.f32 %v72, %v66
    %v74 = vand.u32 2147483647, %v66
    %vm75 = vcmp.lt.f32.partialorder %v74, 0.0004427343
    %v76 = vsel %vm75, %v73, %v70
    %v77 = vadd.f32 %v67, %v76
    %v78 = vsub.f32 0.0, %v77
    %vm79 = vcmp.ge.f32.partialorder %v62, 0.0
    %v80 = vsel %vm79, %v66, 1.0
    %v81 = vadd.f32 %v66, 1.0
    %v82 = vrcp.pop %v81
    %v83 = vmul.f32 %v80, %v82
    %v84 = vsub.f32 1.0, %v83
    %v85 = vmul.f32 %v84, %v84
    %v86 = vsub.f32 0.0, %v85
    %v87 = vmul.f32 %v78, 0.5
    %v88 = vmul.f32 %v86, %v87
    %v89 = vlaneseq
    %v90 = vshrl.u32 %v89, 7
    %v91 = vlaneseq
    %v92 = vand.u32 %v91, 127
    %s93 = smul.u32 0, 8
    %v94 = vstv %s93
    %v95 = vadd.s32 %v94, %v90
    %v96 = vmul.u32 %v95, 128
    %v97 = vadd.s32 %v96, %v92
    %vm98 = vcmp.lt.s32.totalorder %v97, 512
    %v99 = vsel %vm98, %v88, 0.0
    %s100 = sld [smem:[#allocation2]]
    %101 = vadd.xlane.f32.xlu0 %v99
    %v102 = vpop.xlane.xlu0 %101
    %v103 = vrot.slane %v102, 4
    %v104 = vadd.f32 %v102, %v103
    %v105 = vrot.slane %v104, 2
    %v106 = vadd.f32 %v104, %v105
    %v107 = vrot.slane %v106, 1
    %v108 = vadd.f32 %v106, %v107
    %s109 = vtos %v108
    %s110 = sadd.f32 %s100, %s109
    %s111 = scalar_lea.smem [#allocation2], 0
    %112 = sst [smem:[%s111]] %s110
    // Predicated region
    $region30: #{tpu_custom_call.1} parent=1 // pred_check
      %p113 = pneg %p50
    $region31: #{tpu_custom_call.1} parent=1 // pred_check_branch
      %115 = sbr.rel (%p113) target = $region33
    $region32: #{tpu_custom_call.1} parent=1 // pred_region
      %s116 = sld [smem:[#allocation2]]
      %s117 = smul.f32 %s116, 0.001953125
      %s118 = scalar_lea.smem [#allocation9], 0
      %119 = sst [smem:[%s118]] %s117
    $region33: #{tpu_custom_call.1} parent=1 // pred_fallthru
      _
    // Predicated region
    $region34: #{tpu_custom_call.1} parent=1 // pred_check
      _
    $region35: #{tpu_custom_call.1} parent=1 // pred_check_branch
      %121 = sbr.rel (0) target = $region37
    $region36: #{tpu_custom_call.1} parent=1 // pred_region
      %s123 = ssub.s32 16, 16
      %124 = vsyncadd [#allocation5], %s123
      %127 = dma.smem_to_hbm [#allocation9], 16, %s3, [#allocation5]
    $region37: #{tpu_custom_call.1} parent=1 // pred_fallthru
      _
    // Predicated region
    $region38: #{tpu_custom_call.1} parent=1 // pred_check
      _
    $region39: #{tpu_custom_call.1} parent=1 // pred_check_branch
      %129 = sbr.rel (0) target = $region41
    $region40: #{tpu_custom_call.1} parent=1 // pred_region
      %130 = dma.done [#allocation5], 16
    $region41: #{tpu_custom_call.1} parent=1 // pred_fallthru
      _
    %131 = sfence
    %132 = vsyncpa [#allocation4], 1
    %133 = vsyncpa [#allocation7], 1
    %134 = vsyncpa [#allocation5], 1

</llo_original>
